<compile_context>
chip_gen: v7x
topology: tpu7x:2x2x1
jax: 0.10.0
libtpu: 0.0.40
codegen_flags: <defaults>
</compile_context>

<pallas_src>
import jax
import jax.numpy as jnp
from jax import lax
from jax.experimental import pallas as pl
from jax.experimental.pallas import tpu as pltpu

# Contract dim 0 of the [L, *] activation tile with dim 0 of the [L, TD]
# weight tile: out[v, d] = sum_l x[l, v] * w[l, d]. The PyTorch permute is
# absorbed into the MXU feed (no [B, V, L] HBM intermediate).
_DN = (((0,), (0,)), ((), ()))


def _embed_kernel_with_mark(x_ref, xm_ref, w_ref, b_ref, o_ref):
    # x_ref: [TB, L, N]  xm_ref: [TB, L, M]  w_ref: [L, TD]  b_ref: [1, TD]
    # o_ref: [TB, V, TD]  (V = N + M)
    w = w_ref[...]
    b = b_ref[...]                               # f32 bias, broadcast add
    n = x_ref.shape[2]
    tb = o_ref.shape[0]
    # Statically unrolled batch loop: all Ref indices are static and both dots
    # of every iteration reuse the resident weight tile.
    for i in range(tb):
        yx = lax.dot_general(x_ref[i], w, dimension_numbers=_DN,
                             preferred_element_type=jnp.float32)
        o_ref[i, :n, :] = (yx + b).astype(o_ref.dtype)
        ym = lax.dot_general(xm_ref[i], w, dimension_numbers=_DN,
                             preferred_element_type=jnp.float32)
        o_ref[i, n:, :] = (ym + b).astype(o_ref.dtype)


def _embed_kernel_no_mark(x_ref, w_ref, b_ref, o_ref):
    # x_ref: [TB, L, N]  w_ref: [L, TD]  b_ref: [1, TD]  o_ref: [TB, N, TD]
    w = w_ref[...]
    b = b_ref[...]
    for i in range(o_ref.shape[0]):
        y = lax.dot_general(x_ref[i], w, dimension_numbers=_DN,
                            preferred_element_type=jnp.float32)
        o_ref[i] = (y + b).astype(o_ref.dtype)


def _pick_td(d_model, seq_len):
    """Widest lane-dense d_model tile (full D unless the weight tile is huge)."""
    if d_model % 128 != 0:
        return d_model          # full-dim block satisfies the (8,128) rule
    td = d_model
    # keep the [L, TD] f32 weight tile <= ~4 MiB; halve while staying a
    # 128-multiple divisor of D
    while (seq_len * td * 4 > (4 << 20)) and td % 2 == 0 and (td // 2) % 128 == 0:
        td //= 2
    return td


def _pick_tb(batch, seq_len, n_var, td, budget_bytes=20 << 20):
    """Batches per grid step under a double-buffered ~20 MiB VMEM budget,
    keeping >= 2 batch-tile grid steps when B >= 2 (v7x has 2 TensorCores)."""
    per_b = 2 * 4 * (seq_len * n_var + n_var * td)   # in + out, double-buffered
    fixed = 2 * 4 * (seq_len * td + td)              # weight + bias buffers
    cap = max(1, (budget_bytes - fixed) // per_b)
    if batch >= 2:
        cap = min(cap, (batch + 1) // 2)
    cap = max(1, min(cap, batch))
    for tb in range(int(cap), 0, -1):                # largest divisor of B <= cap
        if batch % tb == 0:
            return tb
    return 1


def data_embedding_inverted(x, x_mark, weight, bias):
    """DataEmbedding_inverted forward (inference; dropout == identity).

    x: [B, L, N], x_mark: [B, L, M] or None, weight: [D, L] (torch nn.Linear
    layout), bias: [D]. Returns [B, N(+M), D].
    """
    B, L, N = x.shape
    D = weight.shape[0]
    M = 0 if x_mark is None else x_mark.shape[2]
    V = N + M
    out_dtype = x.dtype

    TD = _pick_td(D, L)
    nd = D // TD
    TB = _pick_tb(B, L, V, TD)
    nb = B // TB

    w_t = jnp.transpose(weight)                     # [L, D]; tiny, one-time
    b2 = bias.reshape(1, D).astype(jnp.float32)     # bias add kept in f32

    cost = pl.CostEstimate(
        flops=2 * B * V * L * D,
        transcendentals=0,
        bytes_accessed=4 * (B * L * V + L * D + D + B * V * D))

    # Grid: batch tiles outermost ('parallel', >= 2 steps when B >= 2 so both
    # v7x TensorCores get work); d_model tiles innermost so the x block is
    # revisited (not re-DMA'd) across d tiles. nd is 1 for typical d_model.
    grid = (nb, nd)
    x_spec = pl.BlockSpec((TB, L, N), lambda b, d: (b, 0, 0))
    w_spec = pl.BlockSpec((L, TD), lambda b, d: (0, d))
    b_spec = pl.BlockSpec((1, TD), lambda b, d: (0, d))
    o_spec = pl.BlockSpec((TB, V, TD), lambda b, d: (b, 0, d))

    if x_mark is None:
        kernel = _embed_kernel_no_mark
        in_specs = [x_spec, w_spec, b_spec]
        args = (x, w_t, b2)
    else:
        xm_spec = pl.BlockSpec((TB, L, M), lambda b, d: (b, 0, 0))
        kernel = _embed_kernel_with_mark
        in_specs = [x_spec, xm_spec, w_spec, b_spec]
        args = (x, x_mark, w_t, b2)

    out = pl.pallas_call(
        kernel,
        out_shape=jax.ShapeDtypeStruct((B, V, D), out_dtype),
        grid_spec=pltpu.PrefetchScalarGridSpec(
            num_scalar_prefetch=0,
            grid=grid,
            in_specs=in_specs,
            out_specs=o_spec),
        compiler_params=pltpu.CompilerParams(
            dimension_semantics=("parallel", "parallel"),
            vmem_limit_bytes=32 * 1024 * 1024),
        cost_estimate=cost,
    )(*args)
    # Dropout(p=0.1) is identity at inference time (no scaling, no masking).
    return out


if __name__ == "__main__":
    # Small shapes consistent with the module: seq_len L = c_in of the Linear.
    B, L, N, M, D = 2, 16, 4, 3, 32

    key = jax.random.PRNGKey(0)
    kx, km, kw, kb = jax.random.split(key, 4)
    x = jax.random.normal(kx, (B, L, N), dtype=jnp.float32)
    x_mark = jax.random.normal(km, (B, L, M), dtype=jnp.float32)

    # nn.Linear(c_in=L, d_model=D): weight [D, L], bias [D].
    bound = 1.0 / (L ** 0.5)
    weight = jax.random.uniform(kw, (D, L), minval=-bound, maxval=bound,
                                dtype=jnp.float32)
    bias = jax.random.uniform(kb, (D,), minval=-bound, maxval=bound,
                              dtype=jnp.float32)

    # Path with time-feature marks (forecast / imputation).
    out = data_embedding_inverted(x, x_mark, weight, bias)
    jax.block_until_ready(out)
    x_cat = jnp.concatenate(
        [jnp.transpose(x, (0, 2, 1)), jnp.transpose(x_mark, (0, 2, 1))], axis=1)
    ref = jnp.einsum("bvl,dl->bvd", x_cat, weight) + bias
    assert out.shape == (B, N + M, D)
    assert jnp.allclose(out, ref, atol=1e-5, rtol=1e-5)

    # Path without marks (anomaly_detection / classification).
    out_nm = data_embedding_inverted(x, None, weight, bias)
    jax.block_until_ready(out_nm)
    ref_nm = jnp.einsum("bvl,dl->bvd", jnp.transpose(x, (0, 2, 1)), weight) + bias
    assert out_nm.shape == (B, N, D)
    assert jnp.allclose(out_nm, ref_nm, atol=1e-5, rtol=1e-5)

    print("KERNEL_OK")
</pallas_src>

<mosaic_0001>
module attributes {stable_mosaic.version = 11 : i64} {
  func.func @_embed_kernel_with_mark(%arg0: i32, %arg1: i32, %arg2: memref<1x16x4xf32, #tpu.memory_space<vmem>>, %arg3: memref<1x16x3xf32, #tpu.memory_space<vmem>>, %arg4: memref<16x32xf32, #tpu.memory_space<vmem>>, %arg5: memref<1x32xf32, #tpu.memory_space<vmem>>, %arg6: memref<1x7x32xf32, #tpu.memory_space<vmem>>) attributes {dimension_semantics = [#tpu.dimension_semantics<parallel>, #tpu.dimension_semantics<parallel>], iteration_bounds = array<i64: 2, 1>, scalar_prefetch = 0 : i64, scratch_operands = 0 : i64, tpu.core_type = #tpu.core_type<tc>, window_params = [{transform_indices = @transform_0, window_bounds = array<i64: 1, 16, 4>}, {transform_indices = @transform_1, window_bounds = array<i64: 1, 16, 3>}, {transform_indices = @transform_2, window_bounds = array<i64: 16, 32>}, {transform_indices = @transform_3, window_bounds = array<i64: 1, 32>}, {transform_indices = @transform_4, window_bounds = array<i64: 1, 7, 32>}]} {
    %c0 = arith.constant 0 : index
    %c0_0 = arith.constant 0 : index
    %0 = vector.load %arg4[%c0, %c0_0] : memref<16x32xf32, #tpu.memory_space<vmem>>, vector<16x32xf32>
    %c0_1 = arith.constant 0 : index
    %c0_2 = arith.constant 0 : index
    %1 = vector.load %arg5[%c0_1, %c0_2] : memref<1x32xf32, #tpu.memory_space<vmem>>, vector<1x32xf32>
    %c0_3 = arith.constant 0 : index
    %c0_4 = arith.constant 0 : index
    %c0_5 = arith.constant 0 : index
    %2 = vector.load %arg2[%c0_3, %c0_4, %c0_5] : memref<1x16x4xf32, #tpu.memory_space<vmem>>, vector<1x16x4xf32>
    %3 = vector.shape_cast %2 : vector<1x16x4xf32> to vector<16x4xf32>
    %cst = arith.constant dense<0.000000e+00> : vector<4x32xf32>
    %4 = tpu.matmul %3, %0, %cst {dimension_numbers = #tpu.dot_dimension_numbers<[0], [0], [1], [1], [0, 1, 1, 1], [], []>} : vector<16x4xf32>, vector<16x32xf32>, vector<4x32xf32> -> vector<4x32xf32>
    %5 = vector.broadcast %1 : vector<1x32xf32> to vector<4x32xf32>
    %6 = arith.addf %4, %5 : vector<4x32xf32>
    %c0_6 = arith.constant 0 : index
    %c0_7 = arith.constant 0 : index
    %c0_8 = arith.constant 0 : index
    %7 = vector.load %arg6[%c0_6, %c0_7, %c0_8] : memref<1x7x32xf32, #tpu.memory_space<vmem>>, vector<1x4x32xf32>
    %8 = vector.shape_cast %7 : vector<1x4x32xf32> to vector<4x32xf32>
    %9 = vector.shape_cast %6 : vector<4x32xf32> to vector<1x4x32xf32>
    tpu.vector_store %arg6[%c0_6, %c0_7, %c0_8], %9 {strides = array<i32>} : memref<1x7x32xf32, #tpu.memory_space<vmem>>, vector<1x4x32xf32>,
    %c0_9 = arith.constant 0 : index
    %c0_10 = arith.constant 0 : index
    %c0_11 = arith.constant 0 : index
    %10 = vector.load %arg3[%c0_9, %c0_10, %c0_11] : memref<1x16x3xf32, #tpu.memory_space<vmem>>, vector<1x16x3xf32>
    %11 = vector.shape_cast %10 : vector<1x16x3xf32> to vector<16x3xf32>
    %cst_12 = arith.constant dense<0.000000e+00> : vector<3x32xf32>
    %12 = tpu.matmul %11, %0, %cst_12 {dimension_numbers = #tpu.dot_dimension_numbers<[0], [0], [1], [1], [0, 1, 1, 1], [], []>} : vector<16x3xf32>, vector<16x32xf32>, vector<3x32xf32> -> vector<3x32xf32>
    %13 = vector.broadcast %1 : vector<1x32xf32> to vector<3x32xf32>
    %14 = arith.addf %12, %13 : vector<3x32xf32>
    %c0_13 = arith.constant 0 : index
    %c4 = arith.constant 4 : index
    %c0_14 = arith.constant 0 : index
    %15 = vector.load %arg6[%c0_13, %c4, %c0_14] : memref<1x7x32xf32, #tpu.memory_space<vmem>>, vector<1x3x32xf32>
    %16 = vector.shape_cast %15 : vector<1x3x32xf32> to vector<3x32xf32>
    %17 = vector.shape_cast %14 : vector<3x32xf32> to vector<1x3x32xf32>
    tpu.vector_store %arg6[%c0_13, %c4, %c0_14], %17 {strides = array<i32>} : memref<1x7x32xf32, #tpu.memory_space<vmem>>, vector<1x3x32xf32>,
    return
  }
  func.func @transform_0(%arg0: i32, %arg1: i32) -> (i32, i32, i32) {
    %c0_i32 = arith.constant 0 : i32
    %c0_i32_0 = arith.constant 0 : i32
    %c0_i32_1 = arith.constant 0 : i32
    return %arg0, %c0_i32, %c0_i32_0 : i32, i32, i32
  }
  func.func @transform_1(%arg0: i32, %arg1: i32) -> (i32, i32, i32) {
    %c0_i32 = arith.constant 0 : i32
    %c0_i32_0 = arith.constant 0 : i32
    %c0_i32_1 = arith.constant 0 : i32
    return %arg0, %c0_i32, %c0_i32_0 : i32, i32, i32
  }
  func.func @transform_2(%arg0: i32, %arg1: i32) -> (i32, i32) {
    %c0_i32 = arith.constant 0 : i32
    %c0_i32_0 = arith.constant 0 : i32
    return %c0_i32, %arg1 : i32, i32
  }
  func.func @transform_3(%arg0: i32, %arg1: i32) -> (i32, i32) {
    %c0_i32 = arith.constant 0 : i32
    %c0_i32_0 = arith.constant 0 : i32
    return %c0_i32, %arg1 : i32, i32
  }
  func.func @transform_4(%arg0: i32, %arg1: i32) -> (i32, i32, i32) {
    %c0_i32 = arith.constant 0 : i32
    %c0_i32_0 = arith.constant 0 : i32
    return %arg0, %c0_i32, %arg1 : i32, i32, i32
  }
}

</mosaic_0001>

<llo_original>
// kernel: tpu_custom_call.1
$region0: #{tpu_custom_call.1}
  #allocation0 [shape = 'u32[]', space=smem, size = 0x4, offset = 0x4, fixed_abs, tag = 'smem constant byte address 0x4 - core index']
  #allocation1 [shape = 'u32[144,128]{1,0:T(1,128)}', space=vmem, size = 0x12000, scoped, tag = 'internal scratch']
  %s0 = inlined_call_operand.vmem [shape: f32[2,16,4], index: 0, kind: input, shape index: {}]
  %s1 = inlined_call_operand.vmem [shape: f32[2,16,3], index: 1, kind: input, shape index: {}]
  %s2 = inlined_call_operand.vmem [shape: f32[16,32], index: 2, kind: input, shape index: {}]
  %s3 = inlined_call_operand.vmem [shape: f32[1,32], index: 3, kind: input, shape index: {}]
  %s4 = inlined_call_operand.vmem [shape: f32[2,7,32], index: 4, kind: output, shape index: {}]
  %s5 = sld [smem:[#allocation0]]
  $region49: #{tpu_custom_call.1} parent=0
    _
  %s7 = ssub.s32 1, %s5
  %s8 = scalar_select 0, %s7, %s5
  loop: start=0, step=1, limit=4
  $region2: #{tpu_custom_call.1} parent=0 // loop_pre_header
    _
  $region3: #{tpu_custom_call.1} parent=0 // loop_header
    %s10 = sphi 0, %s14
    %p11 = scmp.ge.s32.totalorder %s10, 4
    %s17 = sphi 0, %s29
    %s18 = sphi 0, %s25
    %s19 = sphi 0, %s17
    %s20 = sphi 0, %s18
    %s21 = sphi 0, %s19
    %s22 = sphi 0, %s20
    %s32 = sphi 0, %s34
    %s35 = sphi 0, %s32
    %s36 = sphi 0, %s35
    %s52 = sphi 0, %s36
    %s58 = sphi 0, %s60
    %s61 = sphi 0, %s58
    %s62 = sphi 0, %s61
    %s78 = sphi 0, %s62
    %s84 = sphi 0, %s86
    %s87 = sphi 0, %s84
    %s88 = sphi 0, %s87
    %s104 = sphi 0, %s88
    %s110 = sphi 0, %s112
    %s113 = sphi 0, %s110
    %s114 = sphi 0, %s113
    %s130 = sphi 0, %s114
    %s138 = sphi 0, %s140
    %s141 = sphi 0, %s138
    %s142 = sphi 0, %s141
    %s158 = sphi 0, %s142
  $region4: #{tpu_custom_call.1} parent=0 // loop_header_branch
    %13 = sbr.rel (%p11) target = $region8
  $region5: #{tpu_custom_call.1} parent=0 // loop_body
    %s15 = ssub.s32 %s10, 1
    %s16 = ssub.s32 %s10, 2
    %s23 = sadd.s32 1, %s18
    %p24 = scmp.ge.s32.totalorder %s23, 1
    %s25 = scalar_select %p24, 0, %s23
    %s26 = sadd.s32 1, %s17
    %s27 = scalar_select %p24, %s26, %s17
    %p28 = scmp.ge.s32.totalorder %s27, 2
    %s29 = scalar_select %p28, 0, %s27
    %s30 = ssub.s32 %s17, %s29
    %p31 = scmp.eq.s32.totalorder %s30, 0
    %s33 = sadd.s32 %s32, 1
    %s34 = scalar_select %p31, %s32, %s33
    %p37 = pneg %p31
    %p38 = scmp.eq.s32.totalorder %s10, 1
    %p39 = por %p37, %p38
    %p40 = scmp.ne.s32.totalorder %s32, %s35
    %p41 = scmp.eq.s32.totalorder %s10, 0
    %p42 = por %p40, %p41
    %p43 = scmp.ne.s32.totalorder %s32, %s35
    %p44 = scmp.eq.s32.totalorder %s15, 1
    %p45 = por %p43, %p44
    %p46 = scmp.ne.s32.totalorder %s35, %s36
    %p47 = scmp.eq.s32.totalorder %s15, 0
    %p48 = por %p46, %p47
    %p49 = scmp.ne.s32.totalorder %s35, %s36
    %p50 = scmp.eq.s32.totalorder %s16, 1
    %p51 = por %p49, %p50
    %p53 = scmp.ne.s32.totalorder %s36, %s52
    %p54 = scmp.eq.s32.totalorder %s16, 0
    %p55 = por %p53, %p54
    %s56 = ssub.s32 %s17, %s29
    %p57 = scmp.eq.s32.totalorder %s56, 0
    %s59 = sadd.s32 %s58, 1
    %s60 = scalar_select %p57, %s58, %s59
    %p63 = pneg %p57
    %p64 = scmp.eq.s32.totalorder %s10, 1
    %p65 = por %p63, %p64
    %p66 = scmp.ne.s32.totalorder %s58, %s61
    %p67 = scmp.eq.s32.totalorder %s10, 0
    %p68 = por %p66, %p67
    %p69 = scmp.ne.s32.totalorder %s58, %s61
    %p70 = scmp.eq.s32.totalorder %s15, 1
    %p71 = por %p69, %p70
    %p72 = scmp.ne.s32.totalorder %s61, %s62
    %p73 = scmp.eq.s32.totalorder %s15, 0
    %p74 = por %p72, %p73
    %p75 = scmp.ne.s32.totalorder %s61, %s62
    %p76 = scmp.eq.s32.totalorder %s16, 1
    %p77 = por %p75, %p76
    %p79 = scmp.ne.s32.totalorder %s62, %s78
    %p80 = scmp.eq.s32.totalorder %s16, 0
    %p81 = por %p79, %p80
    %s82 = ssub.s32 %s18, %s25
    %p83 = scmp.eq.s32.totalorder %s82, 0
    %s85 = sadd.s32 %s84, 1
    %s86 = scalar_select %p83, %s84, %s85
    %p89 = pneg %p83
    %p90 = scmp.eq.s32.totalorder %s10, 1
    %p91 = por %p89, %p90
    %p92 = scmp.ne.s32.totalorder %s84, %s87
    %p93 = scmp.eq.s32.totalorder %s10, 0
    %p94 = por %p92, %p93
    %p95 = scmp.ne.s32.totalorder %s84, %s87
    %p96 = scmp.eq.s32.totalorder %s15, 1
    %p97 = por %p95, %p96
    %p98 = scmp.ne.s32.totalorder %s87, %s88
    %p99 = scmp.eq.s32.totalorder %s15, 0
    %p100 = por %p98, %p99
    %p101 = scmp.ne.s32.totalorder %s87, %s88
    %p102 = scmp.eq.s32.totalorder %s16, 1
    %p103 = por %p101, %p102
    %p105 = scmp.ne.s32.totalorder %s88, %s104
    %p106 = scmp.eq.s32.totalorder %s16, 0
    %p107 = por %p105, %p106
    %s108 = ssub.s32 %s18, %s25
    %p109 = scmp.eq.s32.totalorder %s108, 0
    %s111 = sadd.s32 %s110, 1
    %s112 = scalar_select %p109, %s110, %s111
    %p115 = pneg %p109
    %p116 = scmp.eq.s32.totalorder %s10, 1
    %p117 = por %p115, %p116
    %p118 = scmp.ne.s32.totalorder %s110, %s113
    %p119 = scmp.eq.s32.totalorder %s10, 0
    %p120 = por %p118, %p119
    %p121 = scmp.ne.s32.totalorder %s110, %s113
    %p122 = scmp.eq.s32.totalorder %s15, 1
    %p123 = por %p121, %p122
    %p124 = scmp.ne.s32.totalorder %s113, %s114
    %p125 = scmp.eq.s32.totalorder %s15, 0
    %p126 = por %p124, %p125
    %p127 = scmp.ne.s32.totalorder %s113, %s114
    %p128 = scmp.eq.s32.totalorder %s16, 1
    %p129 = por %p127, %p128
    %p131 = scmp.ne.s32.totalorder %s114, %s130
    %p132 = scmp.eq.s32.totalorder %s16, 0
    %p133 = por %p131, %p132
    %s134 = ssub.s32 %s17, %s29
    %s135 = ssub.s32 %s18, %s25
    %s136 = sor.u32 %s134, %s135
    %p137 = scmp.eq.s32.totalorder %s136, 0
    %s139 = sadd.s32 %s138, 1
    %s140 = scalar_select %p137, %s138, %s139
    %p143 = pneg %p137
    %p144 = scmp.eq.s32.totalorder %s10, 1
    %p145 = por %p143, %p144
    %p146 = scmp.ne.s32.totalorder %s138, %s141
    %p147 = scmp.eq.s32.totalorder %s10, 0
    %p148 = por %p146, %p147
    %p149 = scmp.ne.s32.totalorder %s138, %s141
    %p150 = scmp.eq.s32.totalorder %s15, 1
    %p151 = por %p149, %p150
    %p152 = scmp.ne.s32.totalorder %s141, %s142
    %p153 = scmp.eq.s32.totalorder %s15, 0
    %p154 = por %p152, %p153
    %p155 = scmp.ne.s32.totalorder %s141, %s142
    %p156 = scmp.eq.s32.totalorder %s16, 1
    %p157 = por %p155, %p156
    %p159 = scmp.ne.s32.totalorder %s142, %s158
    %p160 = scmp.eq.s32.totalorder %s16, 0
    %p161 = por %p159, %p160
    %p162 = scmp.le.s32.totalorder 1, %s10
    %p163 = scmp.lt.s32.totalorder %s10, 3
    %p164 = pnand %p162, %p163
    %p165 = pneg %p164
    // Predicated region
    $region9: #{tpu_custom_call.1} parent=5 // pred_check
      _
    $region10: #{tpu_custom_call.1} parent=5 // pred_check_branch
      %167 = sbr.rel (%p164) target = $region12
    $region11: #{tpu_custom_call.1} parent=5 // pred_region
      %s168 = ssub.s32 %s10, 1
      // Predicated region
      $region13: #{tpu_custom_call.1} parent=11 // pred_check
        %p169 = pneg %p100
      $region14: #{tpu_custom_call.1} parent=11 // pred_check_branch
        %171 = sbr.rel (%p169) target = $region16
      $region15: #{tpu_custom_call.1} parent=11 // pred_region
        %p172 = scmp.lt.s32.totalorder %s20, 0
        %s173 = scalar_select %p172, %s20, 0
        %s174 = smul.addr %s173, 8
        %s175 = scalar_lea.vmem %s2, %s174
      $region16: #{tpu_custom_call.1} parent=11 // pred_fallthru
        _
      // Predicated region
      $region17: #{tpu_custom_call.1} parent=11 // pred_check
        %p176 = pneg %p126
      $region18: #{tpu_custom_call.1} parent=11 // pred_check_branch
        %178 = sbr.rel (%p176) target = $region20
      $region19: #{tpu_custom_call.1} parent=11 // pred_region
        %p179 = scmp.lt.s32.totalorder %s20, 0
        %s180 = scalar_select %p179, %s20, 0
        %s181 = scalar_lea.vmem %s3, %s180
      $region20: #{tpu_custom_call.1} parent=11 // pred_fallthru
        _
    $region12: #{tpu_custom_call.1} parent=5 // pred_fallthru
      _
    %p182 = scmp.lt.s32.totalorder %s10, 2
    // Predicated region
    $region21: #{tpu_custom_call.1} parent=5 // pred_check
      %p183 = pneg %p182
    $region22: #{tpu_custom_call.1} parent=5 // pred_check_branch
      %185 = sbr.rel (%p183) target = $region24
    $region23: #{tpu_custom_call.1} parent=5 // pred_region
      // Predicated region
      $region25: #{tpu_custom_call.1} parent=23 // pred_check
        %p186 = pneg %p42
      $region26: #{tpu_custom_call.1} parent=23 // pred_check_branch
        %188 = sbr.rel (%p186) target = $region28
      $region27: #{tpu_custom_call.1} parent=23 // pred_region
        %p189 = scmp.lt.s32.totalorder %s17, 1
        %s190 = scalar_select %p189, %s17, 1
        %s191 = smul.addr %s190, 2
        %s192 = smul.addr %s191, 8
        %s193 = scalar_lea.vmem %s0, %s192
      $region28: #{tpu_custom_call.1} parent=23 // pred_fallthru
        _
      // Predicated region
      $region29: #{tpu_custom_call.1} parent=23 // pred_check
        %p194 = pneg %p68
      $region30: #{tpu_custom_call.1} parent=23 // pred_check_branch
        %196 = sbr.rel (%p194) target = $region32
      $region31: #{tpu_custom_call.1} parent=23 // pred_region
        %p197 = scmp.lt.s32.totalorder %s17, 1
        %s198 = scalar_select %p197, %s17, 1
        %s199 = smul.addr %s198, 2
        %s200 = smul.addr %s199, 8
        %s201 = scalar_lea.vmem %s1, %s200
      $region32: #{tpu_custom_call.1} parent=23 // pred_fallthru
        _
    $region24: #{tpu_custom_call.1} parent=5 // pred_fallthru
      _
    %p202 = scmp.le.s32.totalorder 1, %s10
    %p203 = scmp.lt.s32.totalorder %s10, 3
    %p204 = pnand %p202, %p203
    %p205 = pneg %p204
    // Predicated region
    $region33: #{tpu_custom_call.1} parent=5 // pred_check
      _
    $region34: #{tpu_custom_call.1} parent=5 // pred_check_branch
      %207 = sbr.rel (%p204) target = $region36
    $region35: #{tpu_custom_call.1} parent=5 // pred_region
      %s208 = ssub.s32 %s10, 1
      %p209 = scmp.lt.s32.totalorder %s19, 1
      %s210 = scalar_select %p209, %s19, 1
      %s211 = smul.addr %s210, 2
      %s212 = smul.addr %s211, 8
      %s213 = scalar_lea.vmem %s0, %s212
      %p214 = pneg %p48
      %p215 = pneg %p45
      %p216 = scmp.lt.s32.totalorder %s19, 1
      %s217 = scalar_select %p216, %s19, 1
      %s218 = smul.addr %s217, 2
      %s219 = smul.addr %s218, 8
      %s220 = scalar_lea.vmem %s1, %s219
      %p221 = pneg %p74
      %p222 = pneg %p71
      %p223 = scmp.lt.s32.totalorder %s20, 0
      %s224 = scalar_select %p223, %s20, 0
      %s225 = smul.addr %s224, 8
      %s226 = scalar_lea.vmem %s2, %s225
      %p227 = pneg %p100
      %p228 = pneg %p97
      %p229 = scmp.lt.s32.totalorder %s20, 0
      %s230 = scalar_select %p229, %s20, 0
      %s231 = scalar_lea.vmem %s3, %s230
      %p232 = pneg %p126
      %p233 = pneg %p123
      %p234 = pneg %p154
      %p235 = pneg %p151
      %p236 = scmp.lt.s32.totalorder %s19, 1
      %s237 = scalar_select %p236, %s19, 1
      %p238 = scmp.lt.s32.totalorder %s20, 0
      %s239 = scalar_select %p238, %s20, 0
      %s240 = sadd.s32 %s239, %s237
      %s241 = smul.addr %s240, 8
      %s242 = scalar_lea.vmem %s4, %s241
      %p243 = scmp.lt.s32.totalorder %s19, 1
      %s244 = scalar_select %p243, %s19, 1
      %s245 = smul.addr %s244, 2
      %s246 = smul.addr %s245, 8
      %s247 = scalar_lea.vmem %s0, %s246
      %p248 = scmp.lt.s32.totalorder %s19, 1
      %s249 = scalar_select %p248, %s19, 1
      %s250 = smul.addr %s249, 2
      %s251 = smul.addr %s250, 8
      %s252 = scalar_lea.vmem %s1, %s251
      %p253 = scmp.lt.s32.totalorder %s20, 0
      %s254 = scalar_select %p253, %s20, 0
      %s255 = smul.addr %s254, 8
      %s256 = scalar_lea.vmem %s2, %s255
      %p257 = scmp.lt.s32.totalorder %s20, 0
      %s258 = scalar_select %p257, %s20, 0
      %s259 = scalar_lea.vmem %s3, %s258
      %p260 = scmp.lt.s32.totalorder %s19, 1
      %s261 = scalar_select %p260, %s19, 1
      %p262 = scmp.lt.s32.totalorder %s20, 0
      %s263 = scalar_select %p262, %s20, 0
      %s264 = sadd.s32 %s263, %s261
      %s265 = smul.addr %s264, 8
      %s266 = scalar_lea.vmem %s4, %s265
      %v267 = vld [vmem:[%s256] sm:$0xff]
      %v268 = vld [vmem:[%s256 + $0x8] sm:$0xff]
      %v269 = vld [vmem:[%s259] sm:$0x1]
      %v270 = vld [vmem:[%s247] sm:$0xff]
      %v271 = vld [vmem:[%s247 + $0x8] sm:$0xff]
      %v273 = vlaneseq
      %v274 = vshrl.u32 %v273, 7
      %v275 = vsub.s32 0, %v274
      %v276 = vrot.slane %v269, %v275
      %278 = vxpose.xlu0.b32.start [1/16] %v270, 128
      %279 = vxpose.xlu0.b32.cont [2/16] %v271, 128
      %280 = vxpose.xlu0.b32.cont [3/16] 0.0, 128
      %281 = vxpose.xlu0.b32.cont [4/16] 0.0, 128
      %282 = vxpose.xlu0.b32.cont [5/16] 0.0, 128
      %283 = vxpose.xlu0.b32.cont [6/16] 0.0, 128
      %284 = vxpose.xlu0.b32.cont [7/16] 0.0, 128
      %285 = vxpose.xlu0.b32.cont [8/16] 0.0, 128
      %286 = vxpose.xlu0.b32.cont [9/16] 0.0, 128
      %287 = vxpose.xlu0.b32.cont [10/16] 0.0, 128
      %288 = vxpose.xlu0.b32.cont [11/16] 0.0, 128
      %289 = vxpose.xlu0.b32.cont [12/16] 0.0, 128
      %290 = vxpose.xlu0.b32.cont [13/16] 0.0, 128
      %291 = vxpose.xlu0.b32.cont [14/16] 0.0, 128
      %292 = vxpose.xlu0.b32.cont [15/16] 0.0, 128
      %293 = vxpose.xlu0.b32.end [16/16] 0.0, 128
      %v294 = vpop.trf.xlu0
      %v295 = vpop.trf.xlu0
      %v296 = vpop.trf.xlu0
      %v297 = vpop.trf.xlu0
      %v298 = vpop.trf.xlu0
      %v299 = vpop.trf.xlu0
      %v300 = vpop.trf.xlu0
      %v301 = vpop.trf.xlu0
      %v302 = vpop.trf.xlu0
      %v303 = vpop.trf.xlu0
      %v304 = vpop.trf.xlu0
      %v305 = vpop.trf.xlu0
      %v306 = vpop.trf.xlu0
      %v307 = vpop.trf.xlu0
      %v308 = vpop.trf.xlu0
      %v309 = vpop.trf.xlu0
      %vm310 = vcmask 130048
      %v312 = vsel %vm310, %v294, 0
      %314 = vmatprep.subr.mxu0 0.0
      %315 = vmatpush1.msra.mxu0 %v267
      %316 = vmatprep.subr.mxu0 0.0
      %317 = vmatpush1.msra.mxu0 %v268
      %318 = vmatprep.subr.mxu0 0.0
      %319 = vmatpush1.msra.mxu0 0.0
      %320 = vmatprep.subr.mxu0 0.0
      %321 = vmatpush1.msra.mxu0 0.0
      %322 = vmatprep.subr.mxu0 0.0
      %323 = vmatpush1.msra.mxu0 0.0
      %324 = vmatprep.subr.mxu0 0.0
      %325 = vmatpush1.msra.mxu0 0.0
      %326 = vmatprep.subr.mxu0 0.0
      %327 = vmatpush1.msra.mxu0 0.0
      %328 = vmatprep.subr.mxu0 0.0
      %329 = vmatpush1.msra.mxu0 0.0
      %330 = vmatprep.subr.mxu0 0.0
      %331 = vmatpush1.msra.mxu0 0.0
      %332 = vmatprep.subr.mxu0 0.0
      %333 = vmatpush1.msra.mxu0 0.0
      %334 = vmatprep.subr.mxu0 0.0
      %335 = vmatpush1.msra.mxu0 0.0
      %336 = vmatprep.subr.mxu0 0.0
      %337 = vmatpush1.msra.mxu0 0.0
      %338 = vmatprep.subr.mxu0 0.0
      %339 = vmatpush1.msra.mxu0 0.0
      %340 = vmatprep.subr.mxu0 0.0
      %341 = vmatpush1.msra.mxu0 0.0
      %342 = vmatprep.subr.mxu0 0.0
      %343 = vmatpush1.msra.mxu0 0.0
      %344 = vmatprep.subr.mxu0 0.0
      %345 = vmatpush1.msra.mxu0 0.0
      %346 = vmatprep.subr.mxu0 0.0
      %347 = vmatpush1.msra.mxu0 0.0
      %348 = vmatprep.subr.mxu0 0.0
      %349 = vmatpush1.msra.mxu0 0.0
      %350 = vmatprep.subr.mxu0 0.0
      %351 = vmatpush1.msra.mxu0 0.0
      %352 = vmatprep.subr.mxu0 0.0
      %353 = vmatpush1.msra.mxu0 0.0
      %354 = vmatprep.subr.mxu0 0.0
      %355 = vmatpush1.msra.mxu0 0.0
      %356 = vmatprep.subr.mxu0 0.0
      %357 = vmatpush1.msra.mxu0 0.0
      %358 = vmatprep.subr.mxu0 0.0
      %359 = vmatpush1.msra.mxu0 0.0
      %360 = vmatprep.subr.mxu0 0.0
      %361 = vmatpush1.msra.mxu0 0.0
      %362 = vmatprep.subr.mxu0 0.0
      %363 = vmatpush1.msra.mxu0 0.0
      %364 = vmatprep.subr.mxu0 0.0
      %365 = vmatpush1.msra.mxu0 0.0
      %366 = vmatprep.subr.mxu0 0.0
      %367 = vmatpush1.msra.mxu0 0.0
      %368 = vmatprep.subr.mxu0 0.0
      %369 = vmatpush1.msra.mxu0 0.0
      %370 = vmatprep.subr.mxu0 0.0
      %371 = vmatpush1.msra.mxu0 0.0
      %372 = vmatprep.subr.mxu0 0.0
      %373 = vmatpush1.msra.mxu0 0.0
      %374 = vmatprep.subr.mxu0 0.0
      %375 = vmatpush1.msra.mxu0 0.0
      %376 = vmatprep.subr.mxu0 0.0
      %377 = vmatpush1.msra.mxu0 0.0
      %378 = vmatprep.mubr.f32.mxu0 0.0
      %379 = vmatmul.mubr.f32.gmra.mrb[0].mxu0 %v312
      %v380 = vpop.f32.mrb[0].mxu0
      %v381 = vadd.f32 %v276, %v380
      %v382 = vpop.f32.mrb[0].mxu0
      %383 = vdwg.mxu0
      %vm384 = vcmask 257024
      %385 = vst.msk [vmem:[%s266] sm:$0xf] %vm384, %v381
      %v386 = vld [vmem:[%s252] sm:$0xff]
      %v387 = vld [vmem:[%s252 + $0x8] sm:$0xff]
      %388 = vxpose.xlu0.b32.start [1/16] %v386, 128
      %389 = vxpose.xlu0.b32.cont [2/16] %v387, 128
      %390 = vxpose.xlu0.b32.cont [3/16] 0.0, 128
      %391 = vxpose.xlu0.b32.cont [4/16] 0.0, 128
      %392 = vxpose.xlu0.b32.cont [5/16] 0.0, 128
      %393 = vxpose.xlu0.b32.cont [6/16] 0.0, 128
      %394 = vxpose.xlu0.b32.cont [7/16] 0.0, 128
      %395 = vxpose.xlu0.b32.cont [8/16] 0.0, 128
      %396 = vxpose.xlu0.b32.cont [9/16] 0.0, 128
      %397 = vxpose.xlu0.b32.cont [10/16] 0.0, 128
      %398 = vxpose.xlu0.b32.cont [11/16] 0.0, 128
      %399 = vxpose.xlu0.b32.cont [12/16] 0.0, 128
      %400 = vxpose.xlu0.b32.cont [13/16] 0.0, 128
      %401 = vxpose.xlu0.b32.cont [14/16] 0.0, 128
      %402 = vxpose.xlu0.b32.cont [15/16] 0.0, 128
      %403 = vxpose.xlu0.b32.end [16/16] 0.0, 128
      %v404 = vpop.trf.xlu0
      %v405 = vpop.trf.xlu0
      %v406 = vpop.trf.xlu0
      %v407 = vpop.trf.xlu0
      %v408 = vpop.trf.xlu0
      %v409 = vpop.trf.xlu0
      %v410 = vpop.trf.xlu0
      %v411 = vpop.trf.xlu0
      %v412 = vpop.trf.xlu0
      %v413 = vpop.trf.xlu0
      %v414 = vpop.trf.xlu0
      %v415 = vpop.trf.xlu0
      %v416 = vpop.trf.xlu0
      %v417 = vpop.trf.xlu0
      %v418 = vpop.trf.xlu0
      %v419 = vpop.trf.xlu0
      %v421 = vsel %vm310, %v404, 0
      %423 = vmatprep.subr.mxu0 0.0
      %424 = vmatpush1.msra.mxu0 %v267
      %425 = vmatprep.subr.mxu0 0.0
      %426 = vmatpush1.msra.mxu0 %v268
      %427 = vmatprep.subr.mxu0 0.0
      %428 = vmatpush1.msra.mxu0 0.0
      %429 = vmatprep.subr.mxu0 0.0
      %430 = vmatpush1.msra.mxu0 0.0
      %431 = vmatprep.subr.mxu0 0.0
      %432 = vmatpush1.msra.mxu0 0.0
      %433 = vmatprep.subr.mxu0 0.0
      %434 = vmatpush1.msra.mxu0 0.0
      %435 = vmatprep.subr.mxu0 0.0
      %436 = vmatpush1.msra.mxu0 0.0
      %437 = vmatprep.subr.mxu0 0.0
      %438 = vmatpush1.msra.mxu0 0.0
      %439 = vmatprep.subr.mxu0 0.0
      %440 = vmatpush1.msra.mxu0 0.0
      %441 = vmatprep.subr.mxu0 0.0
      %442 = vmatpush1.msra.mxu0 0.0
      %443 = vmatprep.subr.mxu0 0.0
      %444 = vmatpush1.msra.mxu0 0.0
      %445 = vmatprep.subr.mxu0 0.0
      %446 = vmatpush1.msra.mxu0 0.0
      %447 = vmatprep.subr.mxu0 0.0
      %448 = vmatpush1.msra.mxu0 0.0
      %449 = vmatprep.subr.mxu0 0.0
      %450 = vmatpush1.msra.mxu0 0.0
      %451 = vmatprep.subr.mxu0 0.0
      %452 = vmatpush1.msra.mxu0 0.0
      %453 = vmatprep.subr.mxu0 0.0
      %454 = vmatpush1.msra.mxu0 0.0
      %455 = vmatprep.subr.mxu0 0.0
      %456 = vmatpush1.msra.mxu0 0.0
      %457 = vmatprep.subr.mxu0 0.0
      %458 = vmatpush1.msra.mxu0 0.0
      %459 = vmatprep.subr.mxu0 0.0
      %460 = vmatpush1.msra.mxu0 0.0
      %461 = vmatprep.subr.mxu0 0.0
      %462 = vmatpush1.msra.mxu0 0.0
      %463 = vmatprep.subr.mxu0 0.0
      %464 = vmatpush1.msra.mxu0 0.0
      %465 = vmatprep.subr.mxu0 0.0
      %466 = vmatpush1.msra.mxu0 0.0
      %467 = vmatprep.subr.mxu0 0.0
      %468 = vmatpush1.msra.mxu0 0.0
      %469 = vmatprep.subr.mxu0 0.0
      %470 = vmatpush1.msra.mxu0 0.0
      %471 = vmatprep.subr.mxu0 0.0
      %472 = vmatpush1.msra.mxu0 0.0
      %473 = vmatprep.subr.mxu0 0.0
      %474 = vmatpush1.msra.mxu0 0.0
      %475 = vmatprep.subr.mxu0 0.0
      %476 = vmatpush1.msra.mxu0 0.0
      %477 = vmatprep.subr.mxu0 0.0
      %478 = vmatpush1.msra.mxu0 0.0
      %479 = vmatprep.subr.mxu0 0.0
      %480 = vmatpush1.msra.mxu0 0.0
      %481 = vmatprep.subr.mxu0 0.0
      %482 = vmatpush1.msra.mxu0 0.0
      %483 = vmatprep.subr.mxu0 0.0
      %484 = vmatpush1.msra.mxu0 0.0
      %485 = vmatprep.subr.mxu0 0.0
      %486 = vmatpush1.msra.mxu0 0.0
      %487 = vmatprep.mubr.f32.mxu0 0.0
      %488 = vmatmul.mubr.f32.gmra.mrb[0].mxu0 %v421
      %v489 = vpop.f32.mrb[0].mxu0
      %v490 = vadd.f32 %v276, %v489
      %v491 = vpop.f32.mrb[0].mxu0
      %492 = vdwg.mxu0
      %vm493 = vcmask 256000
      %494 = vst.msk [vmem:[%s266 + $0x4] sm:$0x7] %vm493, %v490
      %p495 = scmp.lt.s32.totalorder %s19, 1
      %s496 = scalar_select %p495, %s19, 1
      %p497 = scmp.lt.s32.totalorder %s20, 0
      %s498 = scalar_select %p497, %s20, 0
      %s499 = sadd.s32 %s498, %s496
      %s500 = smul.addr %s499, 8
      %s501 = scalar_lea.vmem %s4, %s500
      // Predicated region
      $region37: #{tpu_custom_call.1} parent=35 // pred_check
        %p502 = pneg %p151
      $region38: #{tpu_custom_call.1} parent=35 // pred_check_branch
        %504 = sbr.rel (%p502) target = $region40
      $region39: #{tpu_custom_call.1} parent=35 // pred_region
        _
      $region40: #{tpu_custom_call.1} parent=35 // pred_fallthru
        _
    $region36: #{tpu_custom_call.1} parent=5 // pred_fallthru
      _
    %p505 = scmp.le.s32.totalorder 2, %s10
    // Predicated region
    $region41: #{tpu_custom_call.1} parent=5 // pred_check
      %p506 = pneg %p505
    $region42: #{tpu_custom_call.1} parent=5 // pred_check_branch
      %508 = sbr.rel (%p506) target = $region44
    $region43: #{tpu_custom_call.1} parent=5 // pred_region
      %s509 = ssub.s32 %s10, 2
      // Predicated region
      $region45: #{tpu_custom_call.1} parent=43 // pred_check
        %p510 = pneg %p157
      $region46: #{tpu_custom_call.1} parent=43 // pred_check_branch
        %512 = sbr.rel (%p510) target = $region48
      $region47: #{tpu_custom_call.1} parent=43 // pred_region
        %p513 = scmp.lt.s32.totalorder %s21, 1
        %s514 = scalar_select %p513, %s21, 1
        %p515 = scmp.lt.s32.totalorder %s22, 0
        %s516 = scalar_select %p515, %s22, 0
        %s517 = sadd.s32 %s516, %s514
        %s518 = smul.addr %s517, 8
        %s519 = scalar_lea.vmem %s4, %s518
      $region48: #{tpu_custom_call.1} parent=43 // pred_fallthru
        _
    $region44: #{tpu_custom_call.1} parent=5 // pred_fallthru
      _
  $region6: #{tpu_custom_call.1} parent=0 // loop_footer
    %s14 = sadd.s32 1, %s10
  $region7: #{tpu_custom_call.1} parent=0 // loop_footer_branch
    %9 = sbr.rel target = $region3
  $region8: #{tpu_custom_call.1} parent=0 // loop_exit
    _

</llo_original>
